<compile_context>
chip_gen: v7x
topology: tpu7x:2x2x1
jax: 0.10.0
libtpu: 0.0.40
codegen_flags: <defaults>
</compile_context>

<pallas_src>
import jax
import jax.numpy as jnp
from jax import lax
from jax.experimental import pallas as pl
from jax.experimental.pallas import tpu as pltpu

_EPS = 1e-5  # PyTorch F.layer_norm default eps

_TARGET_TILE_BYTES = 6 * 1024 * 1024   # ~6 MiB input tile (good on v5e/v6e/v7x)
_MIN_LANE_DENSE_DIM = 128              # below this, fall back to XLA


def _sublane_pack(itemsize: int) -> int:
    return {1: 32, 2: 16, 4: 8}.get(itemsize, 8)


def _tpu_vmem_bytes() -> int:
    """Per-core VMEM capacity; conservative 64 MiB (v7x) if the query fails."""
    try:
        info = pltpu.get_tpu_info()
        v = getattr(info, "vmem_capacity_bytes", None)
        if v:
            return int(v)
    except Exception:
        pass
    return 64 * 1024 * 1024


def _pick_tile_rows(rows: int, dim: int, itemsize: int, vmem_bytes: int) -> int:
    """Pick a sublane-aligned row-tile targeting ~6 MiB, capped by VMEM budget."""
    sub = _sublane_pack(itemsize)
    rows_rounded = pl.cdiv(rows, sub) * sub
    row_in_bytes = dim * itemsize

    # VMEM budget (leave headroom for Mosaic internal scratch).  Per tile row
    # we hold: double-buffered input + output (4 * row_in_bytes) plus roughly
    # three f32 rows of temporaries (x_f32 / centered / y) — conservative.
    budget = int(vmem_bytes * 0.7)
    per_row_vmem = 4 * row_in_bytes + 3 * dim * 4
    cap_rows = max(sub, (budget // per_row_vmem) // sub * sub)
    target_rows = max(sub, (_TARGET_TILE_BYTES // row_in_bytes) // sub * sub)

    t = min(target_rows, cap_rows, rows_rounded)
    if t >= rows_rounded:
        if rows_rounded >= 2 * sub:
            # Split into (at least) two blocks so both v7x TensorCores can get
            # work; single-TC chips (v5e/v6e) only pay one extra ~0.35us step.
            t = pl.cdiv(pl.cdiv(rows_rounded, 2), sub) * sub
        else:
            # Tiny problem: one full-array block (block_shape == array shape
            # is always legal regardless of (8,128) alignment).
            t = rows
    return t


def _layernorm_kernel(x_ref, g_ref, b_ref, o_ref):
    # x_ref: (tile_rows, dim); g_ref/b_ref: (1, dim) f32, VMEM-resident.
    # Two-pass moments (mean, then variance of centered x): matches PyTorch
    # numerics; the extra VPU sweep is hidden under the HBM-bound DMA.
    x = x_ref[...].astype(jnp.float32)
    mean = jnp.mean(x, axis=-1, keepdims=True)
    centered = x - mean
    var = jnp.mean(centered * centered, axis=-1, keepdims=True)
    inv = lax.rsqrt(var + _EPS)            # EUP slot, effectively free
    y = centered * inv * g_ref[...] + b_ref[...]
    o_ref[...] = y.astype(o_ref.dtype)


def _layer_norm_xla(x, gamma, beta):
    """Plain-JAX path for dim < 128 (Pallas stores would be lane-masked)."""
    xf = x.astype(jnp.float32)
    mean = jnp.mean(xf, axis=-1, keepdims=True)
    var = jnp.mean((xf - mean) ** 2, axis=-1, keepdims=True)
    y = (xf - mean) * lax.rsqrt(var + _EPS)
    y = y * gamma.astype(jnp.float32) + beta.astype(jnp.float32)
    return y.astype(x.dtype)


@jax.jit
def layer_norm(x, gamma, beta):
    """LayerNorm over the last axis of x, elementwise affine (gamma, beta)."""
    dim = x.shape[-1]
    orig_shape = x.shape

    if dim < _MIN_LANE_DENSE_DIM:
        # Tiny feature dim: output last-dim is not lane-dense; XLA path wins.
        return _layer_norm_xla(x, gamma, beta)

    x2 = x.reshape(-1, dim)
    rows = x2.shape[0]
    itemsize = jnp.dtype(x.dtype).itemsize
    vmem_bytes = _tpu_vmem_bytes()

    tile_rows = _pick_tile_rows(rows, dim, itemsize, vmem_bytes)
    grid_len = pl.cdiv(rows, tile_rows)   # trailing block may be partial

    # Pre-cast affine params to f32 once in the wrapper (no per-step cast).
    g2 = gamma.reshape(1, dim).astype(jnp.float32)
    b2 = beta.reshape(1, dim).astype(jnp.float32)

    # VMEM actually needed: double-buffered in + out tiles, f32 temporaries,
    # plus slack; keep under physical capacity with headroom.
    tile_in_bytes = tile_rows * dim * itemsize
    need = 4 * tile_in_bytes + 3 * tile_rows * dim * 4 + (2 << 20)
    vmem_limit = int(min(max(need, 16 << 20), vmem_bytes - (4 << 20)))

    out = pl.pallas_call(
        _layernorm_kernel,
        out_shape=jax.ShapeDtypeStruct((rows, dim), x.dtype),
        grid_spec=pltpu.PrefetchScalarGridSpec(
            num_scalar_prefetch=0,
            grid=(grid_len,),
            in_specs=[
                pl.BlockSpec((tile_rows, dim), lambda i: (i, 0)),
                pl.BlockSpec((1, dim), lambda i: (0, 0)),
                pl.BlockSpec((1, dim), lambda i: (0, 0)),
            ],
            out_specs=pl.BlockSpec((tile_rows, dim), lambda i: (i, 0)),
        ),
        compiler_params=pltpu.CompilerParams(
            dimension_semantics=("parallel",),
            vmem_limit_bytes=vmem_limit,
        ),
    )(x2, g2, b2)

    return out.reshape(orig_shape)


def _ref_layer_norm(x, gamma, beta):
    xf = x.astype(jnp.float32)
    mean = jnp.mean(xf, axis=-1, keepdims=True)
    var = jnp.mean((xf - mean) ** 2, axis=-1, keepdims=True)
    y = (xf - mean) / jnp.sqrt(var + _EPS)
    y = y * gamma.astype(jnp.float32) + beta.astype(jnp.float32)
    return y.astype(x.dtype)


if __name__ == "__main__":
    key = jax.random.PRNGKey(0)
    k1, k2, k3 = jax.random.split(key, 3)

    # Case A: lane-dense dim, f32, rows divide the tile -> Pallas path (2 blocks).
    dim_a = 256
    x_a = jax.random.normal(k1, (2, 8, dim_a), dtype=jnp.float32)
    g_a = jnp.ones((dim_a,), dtype=jnp.float32)   # nn.Parameter(torch.ones(dim))
    b_a = jnp.zeros((dim_a,), dtype=jnp.float32)  # registered buffer torch.zeros(dim)
    y_a = layer_norm(x_a, g_a, b_a)
    jax.block_until_ready(y_a)
    assert jnp.allclose(y_a, _ref_layer_norm(x_a, g_a, b_a), atol=1e-5, rtol=1e-5)

    # Case B: bf16 input with a ragged row count (21 rows) -> exercises the
    # non-divisible trailing block (masked OOB writes), no pad/slice round-trip.
    x_b = jax.random.normal(k2, (3, 7, dim_a), dtype=jnp.float32).astype(jnp.bfloat16)
    y_b = layer_norm(x_b, g_a, b_a)
    jax.block_until_ready(y_b)
    assert jnp.allclose(y_b.astype(jnp.float32),
                        _ref_layer_norm(x_b, g_a, b_a).astype(jnp.float32),
                        atol=2e-2, rtol=2e-2)

    # Case C: tiny feature dim (dim=32) -> documented XLA fallback path.
    dim_c = 32
    x_c = jax.random.normal(k3, (2, 8, dim_c), dtype=jnp.float32)
    g_c = jnp.ones((dim_c,), dtype=jnp.float32)
    b_c = jnp.zeros((dim_c,), dtype=jnp.float32)
    y_c = layer_norm(x_c, g_c, b_c)
    jax.block_until_ready(y_c)
    assert jnp.allclose(y_c, _ref_layer_norm(x_c, g_c, b_c), atol=1e-5, rtol=1e-5)

    print("KERNEL_OK")
</pallas_src>

<mosaic_0001>
module attributes {stable_mosaic.version = 11 : i64} {
  func.func @_layernorm_kernel(%arg0: i32, %arg1: memref<8x256xf32, #tpu.memory_space<vmem>>, %arg2: memref<1x256xf32, #tpu.memory_space<vmem>>, %arg3: memref<1x256xf32, #tpu.memory_space<vmem>>, %arg4: memref<8x256xf32, #tpu.memory_space<vmem>>) attributes {dimension_semantics = [#tpu.dimension_semantics<parallel>], iteration_bounds = array<i64: 2>, scalar_prefetch = 0 : i64, scratch_operands = 0 : i64, tpu.core_type = #tpu.core_type<tc>, window_params = [{transform_indices = @transform_0, window_bounds = array<i64: 8, 256>}, {pipeline_mode = #tpu.pipeline_mode<synchronous>, transform_indices = @transform_1, window_bounds = array<i64: 1, 256>}, {pipeline_mode = #tpu.pipeline_mode<synchronous>, transform_indices = @transform_2, window_bounds = array<i64: 1, 256>}, {transform_indices = @transform_3, window_bounds = array<i64: 8, 256>}]} {
    %c0 = arith.constant 0 : index
    %c0_0 = arith.constant 0 : index
    %0 = vector.load %arg1[%c0, %c0_0] : memref<8x256xf32, #tpu.memory_space<vmem>>, vector<8x256xf32>
    %cst = arith.constant dense<0.000000e+00> : vector<8xf32>
    %1 = vector.multi_reduction <add>, %0, %cst [1] : vector<8x256xf32> to vector<8xf32>
    %2 = vector.shape_cast %1 : vector<8xf32> to vector<8x1xf32>
    %cst_1 = arith.constant 2.560000e+02 : f32
    %3 = vector.broadcast %cst_1 : f32 to vector<8x1xf32>
    %4 = arith.divf %2, %3 : vector<8x1xf32>
    %5 = vector.broadcast %4 : vector<8x1xf32> to vector<8x256xf32>
    %6 = arith.subf %0, %5 : vector<8x256xf32>
    %7 = arith.mulf %6, %6 : vector<8x256xf32>
    %cst_2 = arith.constant dense<0.000000e+00> : vector<8xf32>
    %8 = vector.multi_reduction <add>, %7, %cst_2 [1] : vector<8x256xf32> to vector<8xf32>
    %9 = vector.shape_cast %8 : vector<8xf32> to vector<8x1xf32>
    %cst_3 = arith.constant 2.560000e+02 : f32
    %10 = vector.broadcast %cst_3 : f32 to vector<8x1xf32>
    %11 = arith.divf %9, %10 : vector<8x1xf32>
    %cst_4 = arith.constant 9.99999974E-6 : f32
    %12 = vector.broadcast %cst_4 : f32 to vector<8x1xf32>
    %13 = arith.addf %11, %12 : vector<8x1xf32>
    %14 = math.rsqrt %13 : vector<8x1xf32>
    %15 = vector.broadcast %14 : vector<8x1xf32> to vector<8x256xf32>
    %16 = arith.mulf %6, %15 : vector<8x256xf32>
    %c0_5 = arith.constant 0 : index
    %c0_6 = arith.constant 0 : index
    %17 = vector.load %arg2[%c0_5, %c0_6] : memref<1x256xf32, #tpu.memory_space<vmem>>, vector<1x256xf32>
    %18 = vector.broadcast %17 : vector<1x256xf32> to vector<8x256xf32>
    %19 = arith.mulf %16, %18 : vector<8x256xf32>
    %c0_7 = arith.constant 0 : index
    %c0_8 = arith.constant 0 : index
    %20 = vector.load %arg3[%c0_7, %c0_8] : memref<1x256xf32, #tpu.memory_space<vmem>>, vector<1x256xf32>
    %21 = vector.broadcast %20 : vector<1x256xf32> to vector<8x256xf32>
    %22 = arith.addf %19, %21 : vector<8x256xf32>
    %c0_9 = arith.constant 0 : index
    %c0_10 = arith.constant 0 : index
    %23 = vector.load %arg4[%c0_9, %c0_10] : memref<8x256xf32, #tpu.memory_space<vmem>>, vector<8x256xf32>
    tpu.vector_store %arg4[%c0_9, %c0_10], %22 {strides = array<i32>} : memref<8x256xf32, #tpu.memory_space<vmem>>, vector<8x256xf32>,
    return
  }
  func.func @transform_0(%arg0: i32) -> (i32, i32) {
    %c0_i32 = arith.constant 0 : i32
    %c0_i32_0 = arith.constant 0 : i32
    return %arg0, %c0_i32 : i32, i32
  }
  func.func @transform_1(%arg0: i32) -> (i32, i32) {
    %c0_i32 = arith.constant 0 : i32
    %c0_i32_0 = arith.constant 0 : i32
    %c0_i32_1 = arith.constant 0 : i32
    return %c0_i32, %c0_i32_0 : i32, i32
  }
  func.func @transform_2(%arg0: i32) -> (i32, i32) {
    %c0_i32 = arith.constant 0 : i32
    %c0_i32_0 = arith.constant 0 : i32
    %c0_i32_1 = arith.constant 0 : i32
    return %c0_i32, %c0_i32_0 : i32, i32
  }
  func.func @transform_3(%arg0: i32) -> (i32, i32) {
    %c0_i32 = arith.constant 0 : i32
    %c0_i32_0 = arith.constant 0 : i32
    return %arg0, %c0_i32 : i32, i32
  }
}

</mosaic_0001>

<llo_original>
// kernel: layer_norm.1
$region0: #{layer_norm.1}
  #allocation0 [shape = 'u32[]', space=smem, size = 0x4, offset = 0x4, fixed_abs, tag = 'smem constant byte address 0x4 - core index']
  #allocation1 [shape = 'u32[144,128]{1,0:T(1,128)}', space=vmem, size = 0x12000, scoped, tag = 'internal scratch']
  %s0 = inlined_call_operand.hbm [shape: f32[16,256], index: 0, kind: input, shape index: {}]
  %s1 = inlined_call_operand.vmem [shape: f32[1,256], index: 1, kind: input, shape index: {}]
  %s2 = inlined_call_operand.vmem [shape: f32[1,256], index: 2, kind: input, shape index: {}]
  %s3 = inlined_call_operand.hbm [shape: f32[16,256], index: 3, kind: output, shape index: {}]
  %s4 = sld [smem:[#allocation0]]
  $region49: #{layer_norm.1} parent=0
    _
  %s6 = ssub.s32 1, %s4
  %s7 = scalar_select 0, %s6, %s4
  $region1: #{layer_norm.1} parent=0
    #allocation2 [shape = 'u8[16384]{0}', space=vmem, size = 0x4000, scoped, tag = 'input window, operand 0']
    #allocation3 [shape = 's32[2]{0}', space=sflag, size = 0x8, scoped, tag = 'scoped memory for layer_norm.1']
    #allocation4 [shape = 's32[2]{0}', space=sflag, size = 0x8, scoped, tag = 'scoped memory for layer_norm.1']
    #allocation5 [shape = 'u8[16384]{0}', space=vmem, size = 0x4000, scoped, tag = 'output window, operand 0']
    %8 = vsyncpa [#allocation3], 0
    %s9 = scalar_lea.sflag [#allocation3], 1
    %10 = vsyncpa %s9, 0
    %11 = vsyncpa [#allocation4], 0
    %s12 = scalar_lea.sflag [#allocation4], 1
    %13 = vsyncpa %s12, 0
    loop: start=0, step=1, limit=4
    $region2: #{layer_norm.1} parent=1 // loop_pre_header
      _
    $region3: #{layer_norm.1} parent=1 // loop_header
      %s15 = sphi 0, %s19
      %p16 = scmp.ge.s32.totalorder %s15, 4
      %s25 = sphi 0, %s27
      %s28 = sphi 0, %s25
      %s29 = sphi 0, %s28
      %s45 = sphi 0, %s29
      %s49 = sphi 0, %s49
      %s51 = sphi 0, %s49
      %s52 = sphi 0, %s51
      %s66 = sphi 0, %s52
      %s70 = sphi 0, %s70
      %s72 = sphi 0, %s70
      %s73 = sphi 0, %s72
      %s87 = sphi 0, %s73
      %s93 = sphi 0, %s95
      %s96 = sphi 0, %s93
      %s97 = sphi 0, %s96
      %s113 = sphi 0, %s97
    $region4: #{layer_norm.1} parent=1 // loop_header_branch
      %18 = sbr.rel (%p16) target = $region8
    $region5: #{layer_norm.1} parent=1 // loop_body
      %s20 = ssub.s32 %s15, 1
      %s21 = ssub.s32 %s15, 2
      %s22 = sadd.s32 %s15, 1
      %s23 = ssub.s32 %s15, %s22
      %p24 = scmp.eq.s32.totalorder %s23, 0
      %s26 = sadd.s32 %s25, 1
      %s27 = scalar_select %p24, %s25, %s26
      %p30 = pneg %p24
      %p31 = scmp.eq.s32.totalorder %s15, 1
      %p32 = por %p30, %p31
      %p33 = scmp.ne.s32.totalorder %s25, %s28
      %p34 = scmp.eq.s32.totalorder %s15, 0
      %p35 = por %p33, %p34
      %p36 = scmp.ne.s32.totalorder %s25, %s28
      %p37 = scmp.eq.s32.totalorder %s20, 1
      %p38 = por %p36, %p37
      %p39 = scmp.ne.s32.totalorder %s28, %s29
      %p40 = scmp.eq.s32.totalorder %s20, 0
      %p41 = por %p39, %p40
      %p42 = scmp.ne.s32.totalorder %s28, %s29
      %p43 = scmp.eq.s32.totalorder %s21, 1
      %p44 = por %p42, %p43
      %p46 = scmp.ne.s32.totalorder %s29, %s45
      %p47 = scmp.eq.s32.totalorder %s21, 0
      %p48 = por %p46, %p47
      %s50 = sadd.s32 %s49, 1
      %p53 = scmp.eq.s32.totalorder %s15, 1
      %p54 = scmp.ne.s32.totalorder %s49, %s51
      %p55 = scmp.eq.s32.totalorder %s15, 0
      %p56 = por %p54, %p55
      %p57 = scmp.ne.s32.totalorder %s49, %s51
      %p58 = scmp.eq.s32.totalorder %s20, 1
      %p59 = por %p57, %p58
      %p60 = scmp.ne.s32.totalorder %s51, %s52
      %p61 = scmp.eq.s32.totalorder %s20, 0
      %p62 = por %p60, %p61
      %p63 = scmp.ne.s32.totalorder %s51, %s52
      %p64 = scmp.eq.s32.totalorder %s21, 1
      %p65 = por %p63, %p64
      %p67 = scmp.ne.s32.totalorder %s52, %s66
      %p68 = scmp.eq.s32.totalorder %s21, 0
      %p69 = por %p67, %p68
      %s71 = sadd.s32 %s70, 1
      %p74 = scmp.eq.s32.totalorder %s15, 1
      %p75 = scmp.ne.s32.totalorder %s70, %s72
      %p76 = scmp.eq.s32.totalorder %s15, 0
      %p77 = por %p75, %p76
      %p78 = scmp.ne.s32.totalorder %s70, %s72
      %p79 = scmp.eq.s32.totalorder %s20, 1
      %p80 = por %p78, %p79
      %p81 = scmp.ne.s32.totalorder %s72, %s73
      %p82 = scmp.eq.s32.totalorder %s20, 0
      %p83 = por %p81, %p82
      %p84 = scmp.ne.s32.totalorder %s72, %s73
      %p85 = scmp.eq.s32.totalorder %s21, 1
      %p86 = por %p84, %p85
      %p88 = scmp.ne.s32.totalorder %s73, %s87
      %p89 = scmp.eq.s32.totalorder %s21, 0
      %p90 = por %p88, %p89
      %s91 = ssub.s32 %s15, %s22
      %p92 = scmp.eq.s32.totalorder %s91, 0
      %s94 = sadd.s32 %s93, 1
      %s95 = scalar_select %p92, %s93, %s94
      %p98 = pneg %p92
      %p99 = scmp.eq.s32.totalorder %s15, 1
      %p100 = por %p98, %p99
      %p101 = scmp.ne.s32.totalorder %s93, %s96
      %p102 = scmp.eq.s32.totalorder %s15, 0
      %p103 = por %p101, %p102
      %p104 = scmp.ne.s32.totalorder %s93, %s96
      %p105 = scmp.eq.s32.totalorder %s20, 1
      %p106 = por %p104, %p105
      %p107 = scmp.ne.s32.totalorder %s96, %s97
      %p108 = scmp.eq.s32.totalorder %s20, 0
      %p109 = por %p107, %p108
      %p110 = scmp.ne.s32.totalorder %s96, %s97
      %p111 = scmp.eq.s32.totalorder %s21, 1
      %p112 = por %p110, %p111
      %p114 = scmp.ne.s32.totalorder %s97, %s113
      %p115 = scmp.eq.s32.totalorder %s21, 0
      %p116 = por %p114, %p115
      %p117 = scmp.le.s32.totalorder 1, %s15
      %p118 = scmp.lt.s32.totalorder %s15, 3
      %p119 = pnand %p117, %p118
      %p120 = pneg %p119
      // Predicated region
      $region9: #{layer_norm.1} parent=5 // pred_check
        _
      $region10: #{layer_norm.1} parent=5 // pred_check_branch
        %122 = sbr.rel (%p119) target = $region12
      $region11: #{layer_norm.1} parent=5 // pred_region
        %s123 = ssub.s32 %s15, 1
        // Predicated region
        $region13: #{layer_norm.1} parent=11 // pred_check
          %p124 = pneg %p62
        $region14: #{layer_norm.1} parent=11 // pred_check_branch
          %126 = sbr.rel (%p124) target = $region16
        $region15: #{layer_norm.1} parent=11 // pred_region
          _
        $region16: #{layer_norm.1} parent=11 // pred_fallthru
          _
        // Predicated region
        $region17: #{layer_norm.1} parent=11 // pred_check
          %p127 = pneg %p83
        $region18: #{layer_norm.1} parent=11 // pred_check_branch
          %129 = sbr.rel (%p127) target = $region20
        $region19: #{layer_norm.1} parent=11 // pred_region
          _
        $region20: #{layer_norm.1} parent=11 // pred_fallthru
          _
      $region12: #{layer_norm.1} parent=5 // pred_fallthru
        _
      %p130 = scmp.lt.s32.totalorder %s15, 2
      // Predicated region
      $region21: #{layer_norm.1} parent=5 // pred_check
        %p131 = pneg %p130
      $region22: #{layer_norm.1} parent=5 // pred_check_branch
        %133 = sbr.rel (%p131) target = $region24
      $region23: #{layer_norm.1} parent=5 // pred_region
        // Predicated region
        $region25: #{layer_norm.1} parent=23 // pred_check
          %p134 = pneg %p35
        $region26: #{layer_norm.1} parent=23 // pred_check_branch
          %136 = sbr.rel (%p134) target = $region28
        $region27: #{layer_norm.1} parent=23 // pred_region
          %s137 = sand.u32 %s25, 1
          %s138 = scalar_lea.sflag [#allocation3], %s137
          %s139 = sand.u32 %s25, 1
          %s140 = smul.addr %s139, 16
          %s141 = scalar_lea.vmem [#allocation2], %s140
          %s143 = ssub.s32 256, 256
          %144 = vsyncadd %s138, %s143
          %s145 = smul.addr %s15, 2
          %s146 = smul.addr %s145, 128
          %s147 = scalar_lea.hbm %s0, %s146
          %s149 = sshll.u32 %s141, 4
          %s150 = int_to_ptr.vmem [resolvable:$true] %s149
          %152 = dma.hbm_to_vmem [thread:$0]  %s147, 256, %s150, %s138
        $region28: #{layer_norm.1} parent=23 // pred_fallthru
          _
      $region24: #{layer_norm.1} parent=5 // pred_fallthru
        _
      %p153 = scmp.le.s32.totalorder 1, %s15
      %p154 = scmp.lt.s32.totalorder %s15, 3
      %p155 = pnand %p153, %p154
      %p156 = pneg %p155
      // Predicated region
      $region29: #{layer_norm.1} parent=5 // pred_check
        _
      $region30: #{layer_norm.1} parent=5 // pred_check_branch
        %158 = sbr.rel (%p155) target = $region32
      $region31: #{layer_norm.1} parent=5 // pred_region
        %s159 = ssub.s32 %s15, 1
        %s160 = sand.u32 %s28, 1
        %s161 = scalar_lea.sflag [#allocation3], %s160
        %s162 = sand.u32 %s28, 1
        %s163 = smul.addr %s162, 16
        %s164 = scalar_lea.vmem [#allocation2], %s163
        // Predicated region
        $region33: #{layer_norm.1} parent=31 // pred_check
          %p165 = pneg %p41
        $region34: #{layer_norm.1} parent=31 // pred_check_branch
          %167 = sbr.rel (%p165) target = $region36
        $region35: #{layer_norm.1} parent=31 // pred_region
          %168 = dma.done %s161, 256
        $region36: #{layer_norm.1} parent=31 // pred_fallthru
          _
        %s169 = sand.u32 %s28, 1
        %s170 = scalar_lea.sflag [#allocation3], %s169
        %s171 = sand.u32 %s28, 1
        %s172 = smul.addr %s171, 16
        %s173 = scalar_lea.vmem [#allocation2], %s172
        %p174 = pneg %p41
        %p175 = pneg %p38
        %p176 = pneg %p62
        %p177 = pneg %p59
        %p178 = pneg %p83
        %p179 = pneg %p80
        %p180 = pneg %p109
        %p181 = pneg %p106
        %s182 = sand.u32 %s96, 1
        %s183 = scalar_lea.sflag [#allocation4], %s182
        %s184 = sand.u32 %s96, 1
        %s185 = smul.addr %s184, 16
        %s186 = scalar_lea.vmem [#allocation5], %s185
        %v187 = vld [vmem:[%s164] sm:$0xff]
        %v188 = vld [vmem:[%s164 + $0x8] sm:$0xff]
        %v189 = vadd.f32 %v187, %v188
        %190 = vadd.xlane.f32.xlu0 %v189
        %v191 = vpop.xlane.xlu0 %190
        %v192 = vrcp.pop 256.0
        %v193 = vmul.f32 %v191, %v192
        %v194 = vsub.f32 %v187, %v193
        %v195 = vsub.f32 %v188, %v193
        %v196 = vmul.f32 %v194, %v194
        %v197 = vmul.f32 %v195, %v195
        %v198 = vadd.f32 %v196, %v197
        %199 = vadd.xlane.f32.xlu0 %v198
        %v200 = vpop.xlane.xlu0 %199
        %v201 = vmul.f32 %v200, %v192
        %v202 = vadd.f32 %v201, 1e-05
        %v203 = vrsqrt.pop %v202
        %v204 = vmul.f32 %v194, %v203
        %v205 = vmul.f32 %v195, %v203
        %v206 = vld [vmem:[%s1] sm:$0x3]
        %v208 = vlaneseq
        %v209 = vshrl.u32 %v208, 7
        %v210 = vsub.s32 0, %v209
        %v211 = vrot.slane %v206, %v210
        %v212 = vlaneseq
        %v213 = vshrl.u32 %v212, 7
        %v214 = vsub.s32 1, %v213
        %v215 = vrot.slane %v206, %v214
        %v218 = vmul.f32 %v204, %v211
        %v219 = vmul.f32 %v205, %v215
        %v220 = vld [vmem:[%s2] sm:$0x3]
        %v222 = vlaneseq
        %v223 = vshrl.u32 %v222, 7
        %v224 = vsub.s32 0, %v223
        %v225 = vrot.slane %v220, %v224
        %v226 = vlaneseq
        %v227 = vshrl.u32 %v226, 7
        %v228 = vsub.s32 1, %v227
        %v229 = vrot.slane %v220, %v228
        %v232 = vadd.f32 %v218, %v225
        %v233 = vadd.f32 %v219, %v229
        %234 = vst [vmem:[%s186] sm:$0xff] %v232
        %235 = vst [vmem:[%s186 + $0x8] sm:$0xff] %v233
        %s236 = sand.u32 %s96, 1
        %s237 = scalar_lea.sflag [#allocation4], %s236
        %s238 = sand.u32 %s96, 1
        %s239 = smul.addr %s238, 16
        %s240 = scalar_lea.vmem [#allocation5], %s239
        // Predicated region
        $region37: #{layer_norm.1} parent=31 // pred_check
          %p241 = pneg %p106
        $region38: #{layer_norm.1} parent=31 // pred_check_branch
          %243 = sbr.rel (%p241) target = $region40
        $region39: #{layer_norm.1} parent=31 // pred_region
          %s245 = ssub.s32 256, 256
          %246 = vsyncadd %s237, %s245
          %s247 = smul.addr %s20, 2
          %s248 = smul.addr %s247, 128
          %s249 = scalar_lea.hbm %s3, %s248
          %s251 = sshll.u32 %s240, 4
          %s252 = int_to_ptr.vmem [resolvable:$true] %s251
          %254 = dma.vmem_to_hbm [thread:$0]  %s252, 256, %s249, %s237
        $region40: #{layer_norm.1} parent=31 // pred_fallthru
          _
      $region32: #{layer_norm.1} parent=5 // pred_fallthru
        _
      %p255 = scmp.le.s32.totalorder 2, %s15
      // Predicated region
      $region41: #{layer_norm.1} parent=5 // pred_check
        %p256 = pneg %p255
      $region42: #{layer_norm.1} parent=5 // pred_check_branch
        %258 = sbr.rel (%p256) target = $region44
      $region43: #{layer_norm.1} parent=5 // pred_region
        %s259 = ssub.s32 %s15, 2
        // Predicated region
        $region45: #{layer_norm.1} parent=43 // pred_check
          %p260 = pneg %p112
        $region46: #{layer_norm.1} parent=43 // pred_check_branch
          %262 = sbr.rel (%p260) target = $region48
        $region47: #{layer_norm.1} parent=43 // pred_region
          %s263 = sand.u32 %s97, 1
          %s264 = scalar_lea.sflag [#allocation4], %s263
          %s265 = sand.u32 %s97, 1
          %s266 = smul.addr %s265, 16
          %s267 = scalar_lea.vmem [#allocation5], %s266
          %268 = dma.done %s264, 256
        $region48: #{layer_norm.1} parent=43 // pred_fallthru
          _
      $region44: #{layer_norm.1} parent=5 // pred_fallthru
        _
    $region6: #{layer_norm.1} parent=1 // loop_footer
      %s19 = sadd.s32 1, %s15
    $region7: #{layer_norm.1} parent=1 // loop_footer_branch
      %14 = sbr.rel target = $region3
    $region8: #{layer_norm.1} parent=1 // loop_exit
      _
    %269 = vsyncpa [#allocation3], 1
    %s270 = scalar_lea.sflag [#allocation3], 1
    %271 = vsyncpa %s270, 1
    %272 = vsyncpa [#allocation4], 1
    %s273 = scalar_lea.sflag [#allocation4], 1
    %274 = vsyncpa %s273, 1

</llo_original>
